<compile_context>
chip_gen: v5e
topology: v5e:2x2
jax: 0.10.0
libtpu: 0.0.40
codegen_flags: <defaults>
</compile_context>

<pallas_src>
import math

import jax
import jax.numpy as jnp
from jax.experimental import pallas as pl
from jax.experimental.pallas import tpu as pltpu


# ------------------------------- helpers -------------------------------------

def _round_up(x, m):
    return ((x + m - 1) // m) * m


def _pad2d(a, rows, cols):
    r, c = a.shape
    if r == rows and c == cols:
        return a
    return jnp.pad(a, ((0, rows - r), (0, cols - c)))


def _pick_tile(dim128, cap):
    """Largest multiple of 128 <= cap that minimizes padding of dim128."""
    cap = max(128, min(cap, dim128))
    best_t, best_pad = 128, _round_up(dim128, 128)
    for t in range(128, cap + 1, 128):
        pad = _round_up(dim128, t)
        if pad < best_pad or (pad == best_pad and t > best_t):
            best_t, best_pad = t, pad
    return best_t


def _geometry(in_dim, out_dim):
    K128 = _round_up(in_dim, 128)
    N128 = _round_up(out_dim, 128)
    tk = _pick_tile(K128, 1024)
    tn = _pick_tile(N128, 1024)
    # v7x has 2 TensorCores; make sure the parallel (i, j) grid has >= 2 tiles
    # by splitting N when it would otherwise be a single tile.
    if N128 // tn < 2 and N128 >= 256:
        tn = _pick_tile(N128, max(128, N128 // 2))
    Kp = _round_up(K128, tk)
    Np = _round_up(N128, tn)
    return Kp, Np, tk, tn


# ------------------------------- kernels -------------------------------------

def _noisy_linear_kernel(x_ref, wmu_ref, wsig_ref, ein_ref, eout_ref,
                         b_ref, o_ref, acc_ref):
    k = pl.program_id(2)

    @pl.when(k == 0)
    def _init():
        acc_ref[...] = jnp.zeros_like(acc_ref)

    # Rank-1 epsilon tile (factorized noise): (tk,1) * (1,tn) broadcast.
    eps = ein_ref[...] * eout_ref[...]                           # (tk, tn) f32
    # Combine in f32 (v5e-safe VPU, preserves noise statistics); bf16 only for
    # the MXU inputs with f32 accumulation.
    w = (wmu_ref[...].astype(jnp.float32)
         + wsig_ref[...].astype(jnp.float32) * eps)              # (tk, tn) f32
    acc_ref[...] += jnp.dot(x_ref[...], w.astype(jnp.bfloat16),
                            preferred_element_type=jnp.float32)

    @pl.when(k == pl.num_programs(2) - 1)
    def _finalize():
        o_ref[...] = (acc_ref[...] + b_ref[...]).astype(o_ref.dtype)


def _plain_linear_kernel(x_ref, w_ref, b_ref, o_ref, acc_ref):
    k = pl.program_id(2)

    @pl.when(k == 0)
    def _init():
        acc_ref[...] = jnp.zeros_like(acc_ref)

    acc_ref[...] += jnp.dot(x_ref[...], w_ref[...],
                            preferred_element_type=jnp.float32)

    @pl.when(k == pl.num_programs(2) - 1)
    def _finalize():
        o_ref[...] = (acc_ref[...] + b_ref[...]).astype(o_ref.dtype)


# -------------------------- cached param preparation ---------------------------

def prepare_noisy_linear_params(params):
    """One-time prep (cache between forwards with fixed params/noise):
    transpose + pad + bf16-cast the weights, pad the factorized noise vectors,
    and pre-combine the bias."""
    out_dim, in_dim = params["weight_mu"].shape
    Kp, Np, tk, tn = _geometry(in_dim, out_dim)

    def prep_w(w):      # [out, in] f32 -> pre-transposed, padded, bf16 [Kp, Np]
        return _pad2d(w.T, Kp, Np).astype(jnp.bfloat16)

    def prep_row(v):    # [out] -> [1, Np] f32
        return _pad2d(v.reshape(1, -1).astype(jnp.float32), 1, Np)

    # Factorized noise: bias_epsilon IS eps_out; recover eps_in if not given.
    eps_out = params["bias_epsilon"]
    if "eps_in" in params:
        eps_in = params["eps_in"]
    else:
        j = jnp.argmax(jnp.abs(eps_out))
        eps_in = params["weight_epsilon"][j] / eps_out[j]

    bias_train = (params["bias_mu"]
                  + params["bias_sigma"] * params["bias_epsilon"])

    return dict(
        w_mu_t=prep_w(params["weight_mu"]),
        w_sigma_t=prep_w(params["weight_sigma"]),
        eps_in_col=_pad2d(eps_in.reshape(-1, 1).astype(jnp.float32), Kp, 1),
        eps_out_row=prep_row(eps_out),
        bias_train=prep_row(bias_train),
        bias_eval=prep_row(params["bias_mu"]),
        in_dim=in_dim, out_dim=out_dim, Kp=Kp, Np=Np, tk=tk, tn=tn)


# ------------------------------ forward (kernel call) ---------------------------

def noisy_linear_forward(x, prepped, *, training=True):
    """NoisyLinear forward. x: [B, in_dim] f32; prepped from prepare_noisy_linear_params."""
    B, in_dim = x.shape
    assert in_dim == prepped["in_dim"]
    Kp, Np = prepped["Kp"], prepped["Np"]
    tk, tn = prepped["tk"], prepped["tn"]
    out_dim = prepped["out_dim"]

    # tb=256 fills the 256-row MXU (v6e/v7x) and halves weight re-streams for
    # big batches; otherwise a 16-multiple (bf16 sublane packing) capped at 128.
    tb = 256 if B >= 256 else min(128, _round_up(B, 16))
    Bp = _round_up(B, tb)
    x_p = _pad2d(x, Bp, Kp).astype(jnp.bfloat16)   # single cast, halves x bytes

    grid = (Bp // tb, Np // tn, Kp // tk)

    x_spec = pl.BlockSpec((tb, tk), lambda i, j, k: (i, k))
    w_spec = pl.BlockSpec((tk, tn), lambda i, j, k: (k, j))
    col_spec = pl.BlockSpec((tk, 1), lambda i, j, k: (k, 0))
    row_spec = pl.BlockSpec((1, tn), lambda i, j, k: (0, j))
    o_spec = pl.BlockSpec((tb, tn), lambda i, j, k: (i, j))

    if training:
        kernel = _noisy_linear_kernel
        inputs = (x_p, prepped["w_mu_t"], prepped["w_sigma_t"],
                  prepped["eps_in_col"], prepped["eps_out_row"],
                  prepped["bias_train"])
        in_specs = [x_spec, w_spec, w_spec, col_spec, row_spec, row_spec]
    else:
        kernel = _plain_linear_kernel
        inputs = (x_p, prepped["w_mu_t"], prepped["bias_eval"])
        in_specs = [x_spec, w_spec, row_spec]

    out_p = pl.pallas_call(
        kernel,
        out_shape=jax.ShapeDtypeStruct((Bp, Np), x.dtype),
        grid_spec=pltpu.PrefetchScalarGridSpec(
            num_scalar_prefetch=0,
            grid=grid,
            in_specs=in_specs,
            out_specs=o_spec,
            scratch_shapes=[pltpu.VMEM((tb, tn), jnp.float32)]),
        compiler_params=pltpu.CompilerParams(
            dimension_semantics=("parallel", "parallel", "arbitrary"),
            vmem_limit_bytes=32 * 1024 * 1024),
    )(*inputs)

    return out_p[:B, :out_dim]


# --------------------------- deterministic init --------------------------------

def _scale_noise(key, size):
    """Factorized gaussian noise: sign(x) * sqrt(|x|), x ~ N(0,1)."""
    x = jax.random.normal(key, (size,), dtype=jnp.float32)
    return jnp.sign(x) * jnp.sqrt(jnp.abs(x))


def init_noisy_linear(key, input_dim, output_dim, std_init=0.5):
    k_wmu, k_ein, k_eout, _ = jax.random.split(key, 4)
    mu_range = 1.0 / math.sqrt(input_dim)

    weight_mu = jax.random.uniform(
        k_wmu, (output_dim, input_dim), jnp.float32,
        minval=-mu_range, maxval=mu_range)
    weight_sigma = jnp.full((output_dim, input_dim),
                            std_init / math.sqrt(input_dim), jnp.float32)
    # The reference reset_parameters() overwrites bias_mu with fill_();
    # bias_sigma is never initialized there, so pick the standard NoisyNet value.
    bias_mu = jnp.full((output_dim,), std_init / math.sqrt(output_dim),
                       jnp.float32)
    bias_sigma = jnp.full((output_dim,), std_init / math.sqrt(output_dim),
                          jnp.float32)

    eps_in = _scale_noise(k_ein, input_dim)
    eps_out = _scale_noise(k_eout, output_dim)
    weight_epsilon = jnp.outer(eps_out, eps_in)
    bias_epsilon = eps_out

    # eps_in is kept so the kernel can exploit the factorized (rank-1) noise;
    # weight_epsilon is retained only for reference checking.
    return dict(weight_mu=weight_mu, weight_sigma=weight_sigma,
                weight_epsilon=weight_epsilon, bias_mu=bias_mu,
                bias_sigma=bias_sigma, bias_epsilon=bias_epsilon,
                eps_in=eps_in)


# ----------------------------------- main ---------------------------------------

if __name__ == "__main__":
    # NOTE: at this demo size the kernel is launch-overhead-bound; the tiling /
    # dtype / rank-1-noise choices above pay off at realistic layer widths.
    B, IN_DIM, OUT_DIM = 8, 32, 64

    key = jax.random.PRNGKey(0)
    k_params, k_x = jax.random.split(key)
    params = init_noisy_linear(k_params, IN_DIM, OUT_DIM, std_init=0.5)
    x = jax.random.normal(k_x, (B, IN_DIM), dtype=jnp.float32)

    # One-time cached prep (transpose/pad/bf16/bias-combine); reuse across forwards.
    prepped = prepare_noisy_linear_params(params)

    y_train = jax.block_until_ready(noisy_linear_forward(x, prepped, training=True))
    y_eval = jax.block_until_ready(noisy_linear_forward(x, prepped, training=False))

    assert y_train.shape == (B, OUT_DIM) and y_eval.shape == (B, OUT_DIM)

    # Reference with matching precision: bf16-stored mu/sigma, f32 combine,
    # bf16 MXU inputs, f32 accumulation, f32 bias add.
    wmu_b = params["weight_mu"].astype(jnp.bfloat16).astype(jnp.float32)
    wsig_b = params["weight_sigma"].astype(jnp.bfloat16).astype(jnp.float32)
    w_eff_bf = (wmu_b + wsig_b * params["weight_epsilon"]).astype(jnp.bfloat16)
    b_eff = params["bias_mu"] + params["bias_sigma"] * params["bias_epsilon"]
    ref_train = jnp.dot(x.astype(jnp.bfloat16), w_eff_bf.T,
                        preferred_element_type=jnp.float32) + b_eff
    ref_eval = jnp.dot(x.astype(jnp.bfloat16),
                       params["weight_mu"].astype(jnp.bfloat16).T,
                       preferred_element_type=jnp.float32) + params["bias_mu"]
    assert jnp.allclose(y_train, ref_train, atol=1e-3, rtol=1e-3)
    assert jnp.allclose(y_eval, ref_eval, atol=1e-3, rtol=1e-3)

    # Full-f32 semantic sanity check (looser tolerance: bf16 streams/MXU inputs).
    w_eff = params["weight_mu"] + params["weight_sigma"] * params["weight_epsilon"]
    ref_train_f32 = x @ w_eff.T + b_eff
    ref_eval_f32 = x @ params["weight_mu"].T + params["bias_mu"]
    assert jnp.allclose(y_train, ref_train_f32, atol=5e-2, rtol=5e-2)
    assert jnp.allclose(y_eval, ref_eval_f32, atol=5e-2, rtol=5e-2)

    print("KERNEL_OK")
</pallas_src>

<mosaic_0001>
module attributes {stable_mosaic.version = 11 : i64} {
  func.func @_noisy_linear_kernel(%arg0: i32, %arg1: i32, %arg2: i32, %arg3: memref<16x128xbf16, #tpu.memory_space<vmem>>, %arg4: memref<128x128xbf16, #tpu.memory_space<vmem>>, %arg5: memref<128x128xbf16, #tpu.memory_space<vmem>>, %arg6: memref<128x1xf32, #tpu.memory_space<vmem>>, %arg7: memref<1x128xf32, #tpu.memory_space<vmem>>, %arg8: memref<1x128xf32, #tpu.memory_space<vmem>>, %arg9: memref<16x128xf32, #tpu.memory_space<vmem>>, %arg10: memref<16x128xf32, #tpu.memory_space<vmem>>) attributes {dimension_semantics = [#tpu.dimension_semantics<parallel>, #tpu.dimension_semantics<parallel>, #tpu.dimension_semantics<arbitrary>], iteration_bounds = array<i64: 1, 1, 1>, scalar_prefetch = 0 : i64, scratch_operands = 1 : i64, tpu.core_type = #tpu.core_type<tc>, window_params = [{transform_indices = @transform_0, window_bounds = array<i64: 16, 128>}, {transform_indices = @transform_1, window_bounds = array<i64: 128, 128>}, {transform_indices = @transform_2, window_bounds = array<i64: 128, 128>}, {transform_indices = @transform_3, window_bounds = array<i64: 128, 1>}, {transform_indices = @transform_4, window_bounds = array<i64: 1, 128>}, {transform_indices = @transform_5, window_bounds = array<i64: 1, 128>}, {transform_indices = @transform_6, window_bounds = array<i64: 16, 128>}]} {
    %c0_i32 = arith.constant 0 : i32
    %0 = arith.cmpi eq, %arg2, %c0_i32 : i32
    %1 = arith.extui %0 : i1 to i32
    %c0_i32_0 = arith.constant 0 : i32
    %2 = arith.cmpi ne, %1, %c0_i32_0 : i32
    scf.if %2 {
      %cst_16 = arith.constant 0.000000e+00 : f32
      %23 = vector.broadcast %cst_16 : f32 to vector<16x128xf32>
      %c0_17 = arith.constant 0 : index
      %c0_18 = arith.constant 0 : index
      %24 = vector.load %arg10[%c0_17, %c0_18] : memref<16x128xf32, #tpu.memory_space<vmem>>, vector<16x128xf32>
      tpu.vector_store %arg10[%c0_17, %c0_18], %23 {strides = array<i32>} : memref<16x128xf32, #tpu.memory_space<vmem>>, vector<16x128xf32>,
    } else {
    }
    %c0 = arith.constant 0 : index
    %c0_1 = arith.constant 0 : index
    %3 = vector.load %arg6[%c0, %c0_1] : memref<128x1xf32, #tpu.memory_space<vmem>>, vector<128x1xf32>
    %c0_2 = arith.constant 0 : index
    %c0_3 = arith.constant 0 : index
    %4 = vector.load %arg7[%c0_2, %c0_3] : memref<1x128xf32, #tpu.memory_space<vmem>>, vector<1x128xf32>
    %5 = vector.broadcast %3 : vector<128x1xf32> to vector<128x128xf32>
    %6 = vector.broadcast %4 : vector<1x128xf32> to vector<128x128xf32>
    %7 = arith.mulf %5, %6 : vector<128x128xf32>
    %c0_4 = arith.constant 0 : index
    %c0_5 = arith.constant 0 : index
    %8 = vector.load %arg4[%c0_4, %c0_5] : memref<128x128xbf16, #tpu.memory_space<vmem>>, vector<128x128xbf16>
    %9 = arith.extf %8 : vector<128x128xbf16> to vector<128x128xf32>
    %c0_6 = arith.constant 0 : index
    %c0_7 = arith.constant 0 : index
    %10 = vector.load %arg5[%c0_6, %c0_7] : memref<128x128xbf16, #tpu.memory_space<vmem>>, vector<128x128xbf16>
    %11 = arith.extf %10 : vector<128x128xbf16> to vector<128x128xf32>
    %12 = arith.mulf %11, %7 : vector<128x128xf32>
    %13 = arith.addf %9, %12 : vector<128x128xf32>
    %c0_8 = arith.constant 0 : index
    %c0_9 = arith.constant 0 : index
    %14 = vector.load %arg10[%c0_8, %c0_9] : memref<16x128xf32, #tpu.memory_space<vmem>>, vector<16x128xf32>
    %c0_10 = arith.constant 0 : index
    %c0_11 = arith.constant 0 : index
    %15 = vector.load %arg3[%c0_10, %c0_11] : memref<16x128xbf16, #tpu.memory_space<vmem>>, vector<16x128xbf16>
    %16 = arith.truncf %13 : vector<128x128xf32> to vector<128x128xbf16>
    %cst = arith.constant dense<0.000000e+00> : vector<16x128xf32>
    %17 = tpu.matmul %15, %16, %cst {dimension_numbers = #tpu.dot_dimension_numbers<[1], [0], [0], [1], [0, 0, 1, 1], [], []>} : vector<16x128xbf16>, vector<128x128xbf16>, vector<16x128xf32> -> vector<16x128xf32>
    %18 = arith.addf %14, %17 : vector<16x128xf32>
    %c0_12 = arith.constant 0 : index
    %c0_13 = arith.constant 0 : index
    %19 = vector.load %arg10[%c0_12, %c0_13] : memref<16x128xf32, #tpu.memory_space<vmem>>, vector<16x128xf32>
    tpu.vector_store %arg10[%c0_12, %c0_13], %18 {strides = array<i32>} : memref<16x128xf32, #tpu.memory_space<vmem>>, vector<16x128xf32>,
    %c0_i32_14 = arith.constant 0 : i32
    %20 = arith.cmpi eq, %arg2, %c0_i32_14 : i32
    %21 = arith.extui %20 : i1 to i32
    %c0_i32_15 = arith.constant 0 : i32
    %22 = arith.cmpi ne, %21, %c0_i32_15 : i32
    scf.if %22 {
      %c0_16 = arith.constant 0 : index
      %c0_17 = arith.constant 0 : index
      %23 = vector.load %arg10[%c0_16, %c0_17] : memref<16x128xf32, #tpu.memory_space<vmem>>, vector<16x128xf32>
      %c0_18 = arith.constant 0 : index
      %c0_19 = arith.constant 0 : index
      %24 = vector.load %arg8[%c0_18, %c0_19] : memref<1x128xf32, #tpu.memory_space<vmem>>, vector<1x128xf32>
      %25 = vector.broadcast %24 : vector<1x128xf32> to vector<16x128xf32>
      %26 = arith.addf %23, %25 : vector<16x128xf32>
      %c0_20 = arith.constant 0 : index
      %c0_21 = arith.constant 0 : index
      %27 = vector.load %arg9[%c0_20, %c0_21] : memref<16x128xf32, #tpu.memory_space<vmem>>, vector<16x128xf32>
      tpu.vector_store %arg9[%c0_20, %c0_21], %26 {strides = array<i32>} : memref<16x128xf32, #tpu.memory_space<vmem>>, vector<16x128xf32>,
    } else {
    }
    return
  }
  func.func @transform_0(%arg0: i32, %arg1: i32, %arg2: i32) -> (i32, i32) {
    %c0_i32 = arith.constant 0 : i32
    return %arg0, %arg2 : i32, i32
  }
  func.func @transform_1(%arg0: i32, %arg1: i32, %arg2: i32) -> (i32, i32) {
    %c0_i32 = arith.constant 0 : i32
    return %arg2, %arg1 : i32, i32
  }
  func.func @transform_2(%arg0: i32, %arg1: i32, %arg2: i32) -> (i32, i32) {
    %c0_i32 = arith.constant 0 : i32
    return %arg2, %arg1 : i32, i32
  }
  func.func @transform_3(%arg0: i32, %arg1: i32, %arg2: i32) -> (i32, i32) {
    %c0_i32 = arith.constant 0 : i32
    %c0_i32_0 = arith.constant 0 : i32
    return %arg2, %c0_i32 : i32, i32
  }
  func.func @transform_4(%arg0: i32, %arg1: i32, %arg2: i32) -> (i32, i32) {
    %c0_i32 = arith.constant 0 : i32
    %c0_i32_0 = arith.constant 0 : i32
    return %c0_i32, %arg1 : i32, i32
  }
  func.func @transform_5(%arg0: i32, %arg1: i32, %arg2: i32) -> (i32, i32) {
    %c0_i32 = arith.constant 0 : i32
    %c0_i32_0 = arith.constant 0 : i32
    return %c0_i32, %arg1 : i32, i32
  }
  func.func @transform_6(%arg0: i32, %arg1: i32, %arg2: i32) -> (i32, i32) {
    %c0_i32 = arith.constant 0 : i32
    return %arg0, %arg1 : i32, i32
  }
}

</mosaic_0001>

<llo_original>
// kernel: tpu_custom_call.1
$region0: #{tpu_custom_call.1}
  #allocation0 [shape = 'u32[]', space=smem, size = 0x4, offset = 0x4, fixed_abs, tag = 'smem constant byte address 0x4 - core index']
  #allocation1 [shape = 'u32[72,128]{1,0:T(1,128)}', space=vmem, size = 0x9000, scoped, tag = 'internal scratch']
  #allocation2 [shape = 'f32[16,128]{1,0:T(8,128)}', space=vmem, size = 0x2000, scoped, tag = 'scratch operand']
  %s0 = inlined_call_operand.hbm [shape: bf16[16,128], index: 0, kind: input, shape index: {}]
  %s1 = inlined_call_operand.vmem [shape: bf16[128,128], index: 1, kind: input, shape index: {}]
  %s2 = inlined_call_operand.vmem [shape: bf16[128,128], index: 2, kind: input, shape index: {}]
  %s3 = inlined_call_operand.vmem [shape: f32[128,1], index: 3, kind: input, shape index: {}]
  %s4 = inlined_call_operand.vmem [shape: f32[1,128], index: 4, kind: input, shape index: {}]
  %s5 = inlined_call_operand.vmem [shape: f32[1,128], index: 5, kind: input, shape index: {}]
  %s6 = inlined_call_operand.hbm [shape: f32[16,128], index: 6, kind: output, shape index: {}]
  %s7 = sld [smem:[#allocation0]]
  $region46: #{tpu_custom_call.1} parent=0
    _
  %s9 = ssub.s32 1, %s7
  %s10 = scalar_select 0, %s9, %s7
  $region1: #{tpu_custom_call.1} parent=0
    #allocation3 [shape = 'u8[4096]{0}', space=vmem, size = 0x1000, scoped, tag = 'input window, operand 0, single buffered']
    #allocation4 [shape = 's32[1]{0}', space=sflag, size = 0x4, scoped, tag = 'scoped memory for tpu_custom_call.1']
    #allocation5 [shape = 's32[1]{0}', space=sflag, size = 0x4, scoped, tag = 'scoped memory for tpu_custom_call.1']
    #allocation6 [shape = 'u8[8192]{0}', space=vmem, size = 0x2000, scoped, tag = 'output window, operand 0, single buffered']
    %11 = vsyncpa [#allocation4], 0
    %12 = vsyncpa [#allocation5], 0
    // Predicated region
    $region2: #{tpu_custom_call.1} parent=1 // pred_check
      _
    $region3: #{tpu_custom_call.1} parent=1 // pred_check_branch
      %14 = sbr.rel (0) target = $region5
    $region4: #{tpu_custom_call.1} parent=1 // pred_region
      %16 = vsyncadd [#allocation4], 0
      %s17 = sshll.u32 %s0, 4
      %s18 = int_to_ptr.hbm [resolvable:$true] %s17
      %s19 = sshll.u32 [#allocation3], 4
      %s20 = int_to_ptr.vmem [resolvable:$true] %s19
      %25 = dma.hbm_to_vmem [thread:$0]  %s18, 128, %s20, [#allocation4], 64, 64, 4
    $region5: #{tpu_custom_call.1} parent=1 // pred_fallthru
      _
    // Predicated region
    $region6: #{tpu_custom_call.1} parent=1 // pred_check
      _
    $region7: #{tpu_custom_call.1} parent=1 // pred_check_branch
      %27 = sbr.rel (0) target = $region9
    $region8: #{tpu_custom_call.1} parent=1 // pred_region
      _
    $region9: #{tpu_custom_call.1} parent=1 // pred_fallthru
      _
    // Predicated region
    $region10: #{tpu_custom_call.1} parent=1 // pred_check
      _
    $region11: #{tpu_custom_call.1} parent=1 // pred_check_branch
      %29 = sbr.rel (0) target = $region13
    $region12: #{tpu_custom_call.1} parent=1 // pred_region
      _
    $region13: #{tpu_custom_call.1} parent=1 // pred_fallthru
      _
    // Predicated region
    $region14: #{tpu_custom_call.1} parent=1 // pred_check
      _
    $region15: #{tpu_custom_call.1} parent=1 // pred_check_branch
      %31 = sbr.rel (0) target = $region17
    $region16: #{tpu_custom_call.1} parent=1 // pred_region
      _
    $region17: #{tpu_custom_call.1} parent=1 // pred_fallthru
      _
    // Predicated region
    $region18: #{tpu_custom_call.1} parent=1 // pred_check
      _
    $region19: #{tpu_custom_call.1} parent=1 // pred_check_branch
      %33 = sbr.rel (0) target = $region21
    $region20: #{tpu_custom_call.1} parent=1 // pred_region
      _
    $region21: #{tpu_custom_call.1} parent=1 // pred_fallthru
      _
    // Predicated region
    $region22: #{tpu_custom_call.1} parent=1 // pred_check
      _
    $region23: #{tpu_custom_call.1} parent=1 // pred_check_branch
      %35 = sbr.rel (0) target = $region25
    $region24: #{tpu_custom_call.1} parent=1 // pred_region
      _
    $region25: #{tpu_custom_call.1} parent=1 // pred_fallthru
      _
    // Predicated region
    $region26: #{tpu_custom_call.1} parent=1 // pred_check
      _
    $region27: #{tpu_custom_call.1} parent=1 // pred_check_branch
      %37 = sbr.rel (0) target = $region29
    $region28: #{tpu_custom_call.1} parent=1 // pred_region
      %39 = dma.done [#allocation4], 128
    $region29: #{tpu_custom_call.1} parent=1 // pred_fallthru
      _
    %p40 = scmp.eq.s32.totalorder 0, 0
    // Predicated region
    $region30: #{tpu_custom_call.1} parent=1 // pred_check
      %p41 = pneg %p40
    $region31: #{tpu_custom_call.1} parent=1 // pred_check_branch
      %43 = sbr.rel (%p41) target = $region33
    $region32: #{tpu_custom_call.1} parent=1 // pred_region
      %44 = vst [vmem:[#allocation2] sm:$0xff] 0.0
      %45 = vst [vmem:[#allocation2 + $0x8] sm:$0xff] 0.0
    $region33: #{tpu_custom_call.1} parent=1 // pred_fallthru
      _
    %v46 = vld [vmem:[%s3] sm:$0xff]
    %v47 = vld [vmem:[%s3 + $0x8] sm:$0xff]
    %v48 = vld [vmem:[%s3 + $0x10] sm:$0xff]
    %v49 = vld [vmem:[%s3 + $0x18] sm:$0xff]
    %v50 = vld [vmem:[%s3 + $0x20] sm:$0xff]
    %v51 = vld [vmem:[%s3 + $0x28] sm:$0xff]
    %v52 = vld [vmem:[%s3 + $0x30] sm:$0xff]
    %v53 = vld [vmem:[%s3 + $0x38] sm:$0xff]
    %v54 = vld [vmem:[%s3 + $0x40] sm:$0xff]
    %v55 = vld [vmem:[%s3 + $0x48] sm:$0xff]
    %v56 = vld [vmem:[%s3 + $0x50] sm:$0xff]
    %v57 = vld [vmem:[%s3 + $0x58] sm:$0xff]
    %v58 = vld [vmem:[%s3 + $0x60] sm:$0xff]
    %v59 = vld [vmem:[%s3 + $0x68] sm:$0xff]
    %v60 = vld [vmem:[%s3 + $0x70] sm:$0xff]
    %v61 = vld [vmem:[%s3 + $0x78] sm:$0xff]
    %v62 = vld [vmem:[%s4] sm:$0x1]
    %64 = vset.pattern.permute.xlu0 0
    %65 = vperm.xlu0 %64, %v46
    %v66 = vpop.permute.xlu0 %65
    %69 = vset.pattern.permute.xlu0 0
    %70 = vperm.xlu0 %69, %v47
    %v71 = vpop.permute.xlu0 %70
    %74 = vset.pattern.permute.xlu0 0
    %75 = vperm.xlu0 %74, %v48
    %v76 = vpop.permute.xlu0 %75
    %79 = vset.pattern.permute.xlu0 0
    %80 = vperm.xlu0 %79, %v49
    %v81 = vpop.permute.xlu0 %80
    %84 = vset.pattern.permute.xlu0 0
    %85 = vperm.xlu0 %84, %v50
    %v86 = vpop.permute.xlu0 %85
    %89 = vset.pattern.permute.xlu0 0
    %90 = vperm.xlu0 %89, %v51
    %v91 = vpop.permute.xlu0 %90
    %94 = vset.pattern.permute.xlu0 0
    %95 = vperm.xlu0 %94, %v52
    %v96 = vpop.permute.xlu0 %95
    %99 = vset.pattern.permute.xlu0 0
    %100 = vperm.xlu0 %99, %v53
    %v101 = vpop.permute.xlu0 %100
    %104 = vset.pattern.permute.xlu0 0
    %105 = vperm.xlu0 %104, %v54
    %v106 = vpop.permute.xlu0 %105
    %109 = vset.pattern.permute.xlu0 0
    %110 = vperm.xlu0 %109, %v55
    %v111 = vpop.permute.xlu0 %110
    %114 = vset.pattern.permute.xlu0 0
    %115 = vperm.xlu0 %114, %v56
    %v116 = vpop.permute.xlu0 %115
    %119 = vset.pattern.permute.xlu0 0
    %120 = vperm.xlu0 %119, %v57
    %v121 = vpop.permute.xlu0 %120
    %124 = vset.pattern.permute.xlu0 0
    %125 = vperm.xlu0 %124, %v58
    %v126 = vpop.permute.xlu0 %125
    %129 = vset.pattern.permute.xlu0 0
    %130 = vperm.xlu0 %129, %v59
    %v131 = vpop.permute.xlu0 %130
    %134 = vset.pattern.permute.xlu0 0
    %135 = vperm.xlu0 %134, %v60
    %v136 = vpop.permute.xlu0 %135
    %139 = vset.pattern.permute.xlu0 0
    %140 = vperm.xlu0 %139, %v61
    %v141 = vpop.permute.xlu0 %140
    %v144 = vperm.slane %v62, 0
    %v146 = vmul.f32 %v66, %v144
    %v147 = vmul.f32 %v71, %v144
    %v148 = vmul.f32 %v76, %v144
    %v149 = vmul.f32 %v81, %v144
    %v150 = vmul.f32 %v86, %v144
    %v151 = vmul.f32 %v91, %v144
    %v152 = vmul.f32 %v96, %v144
    %v153 = vmul.f32 %v101, %v144
    %v154 = vmul.f32 %v106, %v144
    %v155 = vmul.f32 %v111, %v144
    %v156 = vmul.f32 %v116, %v144
    %v157 = vmul.f32 %v121, %v144
    %v158 = vmul.f32 %v126, %v144
    %v159 = vmul.f32 %v131, %v144
    %v160 = vmul.f32 %v136, %v144
    %v161 = vmul.f32 %v141, %v144
    %v162 = vld [vmem:[%s1] sm:$0xf]
    %v163 = vld [vmem:[%s1 + $0x4] sm:$0xf]
    %v164 = vld [vmem:[%s1 + $0x8] sm:$0xf]
    %v165 = vld [vmem:[%s1 + $0xc] sm:$0xf]
    %v166 = vld [vmem:[%s1 + $0x10] sm:$0xf]
    %v167 = vld [vmem:[%s1 + $0x14] sm:$0xf]
    %v168 = vld [vmem:[%s1 + $0x18] sm:$0xf]
    %v169 = vld [vmem:[%s1 + $0x1c] sm:$0xf]
    %v170 = vld [vmem:[%s1 + $0x20] sm:$0xf]
    %v171 = vld [vmem:[%s1 + $0x24] sm:$0xf]
    %v172 = vld [vmem:[%s1 + $0x28] sm:$0xf]
    %v173 = vld [vmem:[%s1 + $0x2c] sm:$0xf]
    %v174 = vld [vmem:[%s1 + $0x30] sm:$0xf]
    %v175 = vld [vmem:[%s1 + $0x34] sm:$0xf]
    %v176 = vld [vmem:[%s1 + $0x38] sm:$0xf]
    %v177 = vld [vmem:[%s1 + $0x3c] sm:$0xf]
    %v178 = vunpack.c.l.bf16 %v162
    %v179 = vunpack.c.l.bf16 %v163
    %v180 = vunpack.c.l.bf16 %v164
    %v181 = vunpack.c.l.bf16 %v165
    %v182 = vunpack.c.l.bf16 %v166
    %v183 = vunpack.c.l.bf16 %v167
    %v184 = vunpack.c.l.bf16 %v168
    %v185 = vunpack.c.l.bf16 %v169
    %v186 = vunpack.c.l.bf16 %v170
    %v187 = vunpack.c.l.bf16 %v171
    %v188 = vunpack.c.l.bf16 %v172
    %v189 = vunpack.c.l.bf16 %v173
    %v190 = vunpack.c.l.bf16 %v174
    %v191 = vunpack.c.l.bf16 %v175
    %v192 = vunpack.c.l.bf16 %v176
    %v193 = vunpack.c.l.bf16 %v177
    %v194 = vld [vmem:[%s2] sm:$0xf]
    %v195 = vld [vmem:[%s2 + $0x4] sm:$0xf]
    %v196 = vld [vmem:[%s2 + $0x8] sm:$0xf]
    %v197 = vld [vmem:[%s2 + $0xc] sm:$0xf]
    %v198 = vld [vmem:[%s2 + $0x10] sm:$0xf]
    %v199 = vld [vmem:[%s2 + $0x14] sm:$0xf]
    %v200 = vld [vmem:[%s2 + $0x18] sm:$0xf]
    %v201 = vld [vmem:[%s2 + $0x1c] sm:$0xf]
    %v202 = vld [vmem:[%s2 + $0x20] sm:$0xf]
    %v203 = vld [vmem:[%s2 + $0x24] sm:$0xf]
    %v204 = vld [vmem:[%s2 + $0x28] sm:$0xf]
    %v205 = vld [vmem:[%s2 + $0x2c] sm:$0xf]
    %v206 = vld [vmem:[%s2 + $0x30] sm:$0xf]
    %v207 = vld [vmem:[%s2 + $0x34] sm:$0xf]
    %v208 = vld [vmem:[%s2 + $0x38] sm:$0xf]
    %v209 = vld [vmem:[%s2 + $0x3c] sm:$0xf]
    %v210 = vunpack.c.l.bf16 %v194
    %v211 = vunpack.c.l.bf16 %v195
    %v212 = vunpack.c.l.bf16 %v196
    %v213 = vunpack.c.l.bf16 %v197
    %v214 = vunpack.c.l.bf16 %v198
    %v215 = vunpack.c.l.bf16 %v199
    %v216 = vunpack.c.l.bf16 %v200
    %v217 = vunpack.c.l.bf16 %v201
    %v218 = vunpack.c.l.bf16 %v202
    %v219 = vunpack.c.l.bf16 %v203
    %v220 = vunpack.c.l.bf16 %v204
    %v221 = vunpack.c.l.bf16 %v205
    %v222 = vunpack.c.l.bf16 %v206
    %v223 = vunpack.c.l.bf16 %v207
    %v224 = vunpack.c.l.bf16 %v208
    %v225 = vunpack.c.l.bf16 %v209
    %v226 = vmul.f32 %v210, %v146
    %v227 = vmul.f32 %v211, %v147
    %v228 = vmul.f32 %v212, %v148
    %v229 = vmul.f32 %v213, %v149
    %v230 = vmul.f32 %v214, %v150
    %v231 = vmul.f32 %v215, %v151
    %v232 = vmul.f32 %v216, %v152
    %v233 = vmul.f32 %v217, %v153
    %v234 = vmul.f32 %v218, %v154
    %v235 = vmul.f32 %v219, %v155
    %v236 = vmul.f32 %v220, %v156
    %v237 = vmul.f32 %v221, %v157
    %v238 = vmul.f32 %v222, %v158
    %v239 = vmul.f32 %v223, %v159
    %v240 = vmul.f32 %v224, %v160
    %v241 = vmul.f32 %v225, %v161
    %v242 = vadd.f32 %v178, %v226
    %v243 = vadd.f32 %v179, %v227
    %v244 = vadd.f32 %v180, %v228
    %v245 = vadd.f32 %v181, %v229
    %v246 = vadd.f32 %v182, %v230
    %v247 = vadd.f32 %v183, %v231
    %v248 = vadd.f32 %v184, %v232
    %v249 = vadd.f32 %v185, %v233
    %v250 = vadd.f32 %v186, %v234
    %v251 = vadd.f32 %v187, %v235
    %v252 = vadd.f32 %v188, %v236
    %v253 = vadd.f32 %v189, %v237
    %v254 = vadd.f32 %v190, %v238
    %v255 = vadd.f32 %v191, %v239
    %v256 = vadd.f32 %v192, %v240
    %v257 = vadd.f32 %v193, %v241
    %v258 = vld [vmem:[#allocation2] sm:$0xff]
    %v259 = vld [vmem:[#allocation2 + $0x8] sm:$0xff]
    %v260 = vld [vmem:[#allocation3] sm:$0xf]
    %v261 = vld [vmem:[#allocation3 + $0x4] sm:$0xf]
    %v262 = vpack.c.bf16 %v243, %v242
    %v263 = vpack.c.bf16 %v245, %v244
    %v264 = vpack.c.bf16 %v247, %v246
    %v265 = vpack.c.bf16 %v249, %v248
    %v266 = vpack.c.bf16 %v251, %v250
    %v267 = vpack.c.bf16 %v253, %v252
    %v268 = vpack.c.bf16 %v255, %v254
    %v269 = vpack.c.bf16 %v257, %v256
    %v272 = vunpack.c.l.b16 %v260
    %v273 = vunpack.c.l.b16 %v261
    %v274 = vpack.c.b16 %v273, %v272
    %276 = vmatpush.bf16.msra.mxu0 %v269
    %277 = vmatpush.bf16.msra.mxu0 %v268
    %278 = vmatpush.bf16.msra.mxu0 %v267
    %279 = vmatpush.bf16.msra.mxu0 %v266
    %280 = vmatpush.bf16.msra.mxu0 %v265
    %281 = vmatpush.bf16.msra.mxu0 %v264
    %282 = vmatpush.bf16.msra.mxu0 %v263
    %283 = vmatpush.bf16.msra.mxu0 %v262
    %284 = vmatmul.bf16.gmra.mxu0 %v274
    %v285 = vpop.f32.mrf.mxu0
    %v286 = vadd.f32 0.0, %v285
    %v287 = vpop.f32.mrf.mxu0
    %v288 = vadd.f32 0.0, %v287
    %289 = vdwg.mxu0
    %v290 = vadd.f32 %v258, %v286
    %v291 = vadd.f32 %v259, %v288
    %292 = vst [vmem:[#allocation2] sm:$0xff] %v290
    %293 = vst [vmem:[#allocation2 + $0x8] sm:$0xff] %v291
    // Predicated region
    $region34: #{tpu_custom_call.1} parent=1 // pred_check
      %p294 = pneg %p40
    $region35: #{tpu_custom_call.1} parent=1 // pred_check_branch
      %296 = sbr.rel (%p294) target = $region37
    $region36: #{tpu_custom_call.1} parent=1 // pred_region
      %v297 = vld [vmem:[#allocation2] sm:$0xff]
      %v298 = vld [vmem:[#allocation2 + $0x8] sm:$0xff]
      %v299 = vld [vmem:[%s5] sm:$0x1]
      %v301 = vperm.slane %v299, 0
      %v303 = vadd.f32 %v297, %v301
      %v304 = vadd.f32 %v298, %v301
      %305 = vst [vmem:[#allocation6] sm:$0xff] %v303
      %306 = vst [vmem:[#allocation6 + $0x8] sm:$0xff] %v304
    $region37: #{tpu_custom_call.1} parent=1 // pred_fallthru
      _
    // Predicated region
    $region38: #{tpu_custom_call.1} parent=1 // pred_check
      _
    $region39: #{tpu_custom_call.1} parent=1 // pred_check_branch
      %308 = sbr.rel (0) target = $region41
    $region40: #{tpu_custom_call.1} parent=1 // pred_region
      %310 = vsyncadd [#allocation5], 0
      %s311 = sshll.u32 [#allocation6], 4
      %s312 = int_to_ptr.vmem [resolvable:$true] %s311
      %s313 = sshll.u32 %s6, 4
      %s314 = int_to_ptr.hbm [resolvable:$true] %s313
      %319 = dma.vmem_to_hbm [thread:$0]  %s312, 256, %s314, [#allocation5], 128, 128, 8
    $region41: #{tpu_custom_call.1} parent=1 // pred_fallthru
      _
    // Predicated region
    $region42: #{tpu_custom_call.1} parent=1 // pred_check
      _
    $region43: #{tpu_custom_call.1} parent=1 // pred_check_branch
      %321 = sbr.rel (0) target = $region45
    $region44: #{tpu_custom_call.1} parent=1 // pred_region
      %323 = dma.done [#allocation5], 256
    $region45: #{tpu_custom_call.1} parent=1 // pred_fallthru
      _
    %324 = vsyncpa [#allocation4], 1
    %325 = vsyncpa [#allocation5], 1

</llo_original>
